<compile_context>
chip_gen: v5e
topology: v5e:2x2
jax: 0.10.0
libtpu: 0.0.40
codegen_flags: <defaults>
</compile_context>

<pallas_src>
import jax
import jax.numpy as jnp
from jax.experimental import pallas as pl
from jax.experimental.pallas import tpu as pltpu

IN_DIM = 28 * 28 * 3      # 2352
H1 = 128
H2 = 64
OUT_DIM = 1


def _round_up(n, m):
    return ((n + m - 1) // m) * m


def _cdiv(a, b):
    return (a + b - 1) // b


def mlp_kernel(x_ref, w1_ref, b1_ref, w2_ref, b2_ref, w3r_ref, b3_ref, o_ref):
    # Layer 1 (2352 -> 128): x is streamed untouched from HBM; cast to w1's
    # (possibly narrow) dtype only here, on the VPU, which is free filler for
    # an HBM-bound kernel. MXU dot with f32 accumulation; ragged K is masked
    # by Mosaic internally.
    x = x_ref[...].astype(w1_ref.dtype)
    a1 = jnp.dot(x, w1_ref[...], preferred_element_type=jnp.float32)
    a1 = jnp.maximum(a1 + b1_ref[...], 0.0)       # bias + ReLU in f32 (VPU)

    # Layer 2 (128 -> 64): tiny, VMEM-resident f32 weights; ~5% of the FLOPs,
    # so keeping it full precision is free and tightens accuracy.
    a2 = jnp.dot(a1, w2_ref[...], preferred_element_type=jnp.float32)
    a2 = jnp.maximum(a2 + b2_ref[...], 0.0)

    # Layer 3 (64 -> 1): degenerate N=1 matmul wastes the MXU; use a VPU
    # broadcast-multiply + lane reduction. Bias is a scalar in SMEM.
    z3 = jnp.sum(a2 * w3r_ref[...], axis=-1, keepdims=True) + b3_ref[0]
    o_ref[...] = jax.nn.sigmoid(z3).astype(o_ref.dtype)


def _vmem_budget():
    """Returns (tb_max, vmem_limit_bytes), generation-aware.

    v5e / v6e: 128 MiB VMEM per TensorCore -> bigger tiles, 96 MiB limit.
    v7x (64 MiB per TC) or unknown: conservative 1024-row tiles, 48 MiB limit.
    """
    cap = None
    try:
        cap = getattr(pltpu.get_tpu_info(), "vmem_capacity_bytes", None)
    except Exception:
        cap = None
    if cap is not None and cap >= 96 * 1024 * 1024:
        return 2048, 96 * 1024 * 1024
    return 1024, 48 * 1024 * 1024


def _choose_tb(B, tb_max):
    """Batch tile size.

    - multiple of 16 rows (bf16 sublane packing), 128 for large B (MXU M align)
    - aims for ~8 grid steps on large B so the x DMA double-buffer overlaps
      with compute
    - >= 2 grid steps once B allows it (v7x has 2 TensorCores)
    - capped by the generation-aware VMEM budget (tb_max)
    """
    if B <= 16:
        return 8
    if B <= 32:
        return 16
    tb = _round_up(_cdiv(B, 8), 128)            # target ~8 grid steps
    tb = max(128, min(tb, tb_max))
    tb = min(tb, _round_up(_cdiv(B, 2), 16))    # keep >= 2 steps for mid-size B
    return int(tb)


def simple_mlp_forward(x, w1, b1, w2, b2, w3, b3, *, compute_dtype=jnp.bfloat16):
    """x: (B, 2352) f32. w1: (2352,128), w2: (128,64), w3: (64,1); biases (1,N)."""
    B_orig = x.shape[0]
    assert x.shape[1] == IN_DIM

    # Tiny-batch guard: the sublane minimum is 8 rows; padding a handful of
    # rows is negligible (this is NOT the full pad/cast pass we removed).
    B = B_orig
    if B < 8:
        x = jnp.pad(x, ((0, 8 - B), (0, 0)))
        B = 8

    tb_max, vmem_limit = _vmem_budget()
    TB = _choose_tb(B, tb_max)
    grid = _cdiv(B, TB)   # ragged last block: reads masked, OOB writes dropped

    # Only the small, VMEM-resident layer-1 weight is cast to the narrow
    # streaming dtype (one-time). Everything else stays f32.
    w1c = w1.astype(compute_dtype)
    b1r = b1.reshape(1, H1).astype(jnp.float32)
    w2c = w2.astype(jnp.float32)
    b2r = b2.reshape(1, H2).astype(jnp.float32)
    w3r = w3.reshape(1, H2).astype(jnp.float32)   # (64, 1) -> row (1, 64)
    b3s = b3.reshape(1).astype(jnp.float32)       # scalar bias for SMEM

    x_bytes = x.dtype.itemsize
    w_bytes = jnp.dtype(compute_dtype).itemsize
    cost = pl.CostEstimate(
        flops=2 * B * (IN_DIM * H1 + H1 * H2 + H2),
        transcendentals=B,
        bytes_accessed=(B * IN_DIM * x_bytes              # x stream (dominant)
                        + IN_DIM * H1 * w_bytes           # w1 (resident)
                        + (H1 * H2 + H1 + H2 + H2 + 1) * 4  # small f32 params
                        + B * OUT_DIM * 4),                 # output
    )

    out = pl.pallas_call(
        mlp_kernel,
        out_shape=jax.ShapeDtypeStruct((B, OUT_DIM), jnp.float32),
        grid=(grid,),
        in_specs=[
            pl.BlockSpec((TB, IN_DIM), lambda i: (i, 0)),        # x: streamed per tile
            pl.BlockSpec((IN_DIM, H1), lambda i: (0, 0)),        # w1: VMEM-resident
            pl.BlockSpec((1, H1), lambda i: (0, 0)),             # b1
            pl.BlockSpec((H1, H2), lambda i: (0, 0)),            # w2
            pl.BlockSpec((1, H2), lambda i: (0, 0)),             # b2
            pl.BlockSpec((1, H2), lambda i: (0, 0)),             # w3 as a row
            pl.BlockSpec(memory_space=pltpu.MemorySpace.SMEM),   # b3 scalar
        ],
        out_specs=pl.BlockSpec((TB, OUT_DIM), lambda i: (i, 0)),
        compiler_params=pltpu.CompilerParams(
            dimension_semantics=("parallel",),
            vmem_limit_bytes=vmem_limit,
        ),
        cost_estimate=cost,
    )(x, w1c, b1r, w2c, b2r, w3r, b3s)

    return out[:B_orig]


def init_params(key):
    # Deterministic init mimicking PyTorch nn.Linear default
    # (U[-1/sqrt(fan_in), 1/sqrt(fan_in)]); weights stored as (in, out) = W.T.
    ks = jax.random.split(key, 6)

    def linear(kw, kb, fan_in, fan_out):
        bound = 1.0 / jnp.sqrt(fan_in)
        w = jax.random.uniform(kw, (fan_in, fan_out), jnp.float32, -bound, bound)
        b = jax.random.uniform(kb, (1, fan_out), jnp.float32, -bound, bound)
        return w, b

    w1, b1 = linear(ks[0], ks[1], IN_DIM, H1)
    w2, b2 = linear(ks[2], ks[3], H1, H2)
    w3, b3 = linear(ks[4], ks[5], H2, OUT_DIM)
    return w1, b1, w2, b2, w3, b3


def reference_forward(x, w1, b1, w2, b2, w3, b3):
    a1 = jnp.maximum(x @ w1 + b1, 0.0)
    a2 = jnp.maximum(a1 @ w2 + b2, 0.0)
    return jax.nn.sigmoid(a2 @ w3 + b3)


if __name__ == "__main__":
    key = jax.random.PRNGKey(0)
    k_x, k_p = jax.random.split(key)

    B = 8  # small self-test batch
    x = jax.random.normal(k_x, (B, IN_DIM), jnp.float32)
    params = init_params(k_p)
    ref = reference_forward(x, *params)

    # f32 path: tight check against the pure-JAX reference.
    out_f32 = jax.block_until_ready(
        simple_mlp_forward(x, *params, compute_dtype=jnp.float32))
    assert out_f32.shape == (B, OUT_DIM)
    assert jnp.allclose(out_f32, ref, atol=1e-5, rtol=1e-5), "f32 mismatch vs reference"

    # bf16 layer-1 stream (default, memory-bound optimum): looser tolerance.
    out_bf16 = jax.block_until_ready(
        simple_mlp_forward(x, *params, compute_dtype=jnp.bfloat16))
    assert out_bf16.shape == (B, OUT_DIM)
    assert jnp.allclose(out_bf16, ref, atol=2e-2, rtol=2e-2), "bf16 mismatch vs reference"

    # NOTE: the PyTorch module also stashes self.a1 / self.a2 as attributes;
    # those are internal activations, not part of the returned value.
    # TODO(synk): expose a1/a2 as extra outputs if a caller ever needs them.
    print("KERNEL_OK")
</pallas_src>

<mosaic_0001>
module attributes {stable_mosaic.version = 11 : i64} {
  func.func @mlp_kernel(%arg0: i32, %arg1: memref<8x2352xf32, #tpu.memory_space<vmem>>, %arg2: memref<2352x128xf32, #tpu.memory_space<vmem>>, %arg3: memref<1x128xf32, #tpu.memory_space<vmem>>, %arg4: memref<128x64xf32, #tpu.memory_space<vmem>>, %arg5: memref<1x64xf32, #tpu.memory_space<vmem>>, %arg6: memref<1x64xf32, #tpu.memory_space<vmem>>, %arg7: memref<1xf32, #tpu.memory_space<smem>>, %arg8: memref<8x1xf32, #tpu.memory_space<vmem>>) attributes {dimension_semantics = [#tpu.dimension_semantics<parallel>], iteration_bounds = array<i64: 1>, scalar_prefetch = 0 : i64, scratch_operands = 0 : i64, tpu.core_type = #tpu.core_type<tc>, window_params = [{transform_indices = @transform_0, window_bounds = array<i64: 8, 2352>}, {pipeline_mode = #tpu.pipeline_mode<synchronous>, transform_indices = @transform_1, window_bounds = array<i64: 2352, 128>}, {pipeline_mode = #tpu.pipeline_mode<synchronous>, transform_indices = @transform_2, window_bounds = array<i64: 1, 128>}, {pipeline_mode = #tpu.pipeline_mode<synchronous>, transform_indices = @transform_3, window_bounds = array<i64: 128, 64>}, {pipeline_mode = #tpu.pipeline_mode<synchronous>, transform_indices = @transform_4, window_bounds = array<i64: 1, 64>}, {pipeline_mode = #tpu.pipeline_mode<synchronous>, transform_indices = @transform_5, window_bounds = array<i64: 1, 64>}, {transform_indices = @transform_6, window_bounds = array<i64: 1>}, {transform_indices = @transform_7, window_bounds = array<i64: 8, 1>}]} {
    %c0 = arith.constant 0 : index
    %c0_0 = arith.constant 0 : index
    %0 = vector.load %arg1[%c0, %c0_0] : memref<8x2352xf32, #tpu.memory_space<vmem>>, vector<8x2352xf32>
    %c0_1 = arith.constant 0 : index
    %c0_2 = arith.constant 0 : index
    %1 = vector.load %arg2[%c0_1, %c0_2] : memref<2352x128xf32, #tpu.memory_space<vmem>>, vector<2352x128xf32>
    %cst = arith.constant dense<0.000000e+00> : vector<8x128xf32>
    %2 = tpu.matmul %0, %1, %cst {dimension_numbers = #tpu.dot_dimension_numbers<[1], [0], [0], [1], [0, 0, 1, 1], [], []>} : vector<8x2352xf32>, vector<2352x128xf32>, vector<8x128xf32> -> vector<8x128xf32>
    %c0_3 = arith.constant 0 : index
    %c0_4 = arith.constant 0 : index
    %3 = vector.load %arg3[%c0_3, %c0_4] : memref<1x128xf32, #tpu.memory_space<vmem>>, vector<1x128xf32>
    %4 = vector.broadcast %3 : vector<1x128xf32> to vector<8x128xf32>
    %5 = arith.addf %2, %4 : vector<8x128xf32>
    %cst_5 = arith.constant 0.000000e+00 : f32
    %6 = vector.broadcast %cst_5 : f32 to vector<8x128xf32>
    %7 = arith.maximumf %5, %6 : vector<8x128xf32>
    %c0_6 = arith.constant 0 : index
    %c0_7 = arith.constant 0 : index
    %8 = vector.load %arg4[%c0_6, %c0_7] : memref<128x64xf32, #tpu.memory_space<vmem>>, vector<128x64xf32>
    %cst_8 = arith.constant dense<0.000000e+00> : vector<8x64xf32>
    %9 = tpu.matmul %7, %8, %cst_8 {dimension_numbers = #tpu.dot_dimension_numbers<[1], [0], [0], [1], [0, 0, 1, 1], [], []>} : vector<8x128xf32>, vector<128x64xf32>, vector<8x64xf32> -> vector<8x64xf32>
    %c0_9 = arith.constant 0 : index
    %c0_10 = arith.constant 0 : index
    %10 = vector.load %arg5[%c0_9, %c0_10] : memref<1x64xf32, #tpu.memory_space<vmem>>, vector<1x64xf32>
    %11 = vector.broadcast %10 : vector<1x64xf32> to vector<8x64xf32>
    %12 = arith.addf %9, %11 : vector<8x64xf32>
    %cst_11 = arith.constant 0.000000e+00 : f32
    %13 = vector.broadcast %cst_11 : f32 to vector<8x64xf32>
    %14 = arith.maximumf %12, %13 : vector<8x64xf32>
    %c0_12 = arith.constant 0 : index
    %c0_13 = arith.constant 0 : index
    %15 = vector.load %arg6[%c0_12, %c0_13] : memref<1x64xf32, #tpu.memory_space<vmem>>, vector<1x64xf32>
    %16 = vector.broadcast %15 : vector<1x64xf32> to vector<8x64xf32>
    %17 = arith.mulf %14, %16 : vector<8x64xf32>
    %cst_14 = arith.constant dense<0.000000e+00> : vector<8xf32>
    %18 = vector.multi_reduction <add>, %17, %cst_14 [1] : vector<8x64xf32> to vector<8xf32>
    %19 = vector.shape_cast %18 : vector<8xf32> to vector<8x1xf32>
    %c0_15 = arith.constant 0 : index
    %20 = memref.load %arg7[%c0_15] : memref<1xf32, #tpu.memory_space<smem>>
    %21 = vector.broadcast %20 : f32 to vector<8x1xf32>
    %22 = arith.addf %19, %21 : vector<8x1xf32>
    %23 = arith.negf %22 : vector<8x1xf32>
    %24 = math.exp %23 : vector<8x1xf32>
    %cst_16 = arith.constant 1.000000e+00 : f32
    %25 = vector.broadcast %cst_16 : f32 to vector<8x1xf32>
    %26 = arith.addf %25, %24 : vector<8x1xf32>
    %27 = arith.divf %25, %26 : vector<8x1xf32>
    %c0_17 = arith.constant 0 : index
    %c0_18 = arith.constant 0 : index
    %28 = vector.load %arg8[%c0_17, %c0_18] : memref<8x1xf32, #tpu.memory_space<vmem>>, vector<8x1xf32>
    tpu.vector_store %arg8[%c0_17, %c0_18], %27 {strides = array<i32>} : memref<8x1xf32, #tpu.memory_space<vmem>>, vector<8x1xf32>,
    return
  }
  func.func @transform_0(%arg0: i32) -> (i32, i32) {
    %c0_i32 = arith.constant 0 : i32
    %c0_i32_0 = arith.constant 0 : i32
    return %arg0, %c0_i32 : i32, i32
  }
  func.func @transform_1(%arg0: i32) -> (i32, i32) {
    %c0_i32 = arith.constant 0 : i32
    %c0_i32_0 = arith.constant 0 : i32
    %c0_i32_1 = arith.constant 0 : i32
    return %c0_i32, %c0_i32_0 : i32, i32
  }
  func.func @transform_2(%arg0: i32) -> (i32, i32) {
    %c0_i32 = arith.constant 0 : i32
    %c0_i32_0 = arith.constant 0 : i32
    %c0_i32_1 = arith.constant 0 : i32
    return %c0_i32, %c0_i32_0 : i32, i32
  }
  func.func @transform_3(%arg0: i32) -> (i32, i32) {
    %c0_i32 = arith.constant 0 : i32
    %c0_i32_0 = arith.constant 0 : i32
    %c0_i32_1 = arith.constant 0 : i32
    return %c0_i32, %c0_i32_0 : i32, i32
  }
  func.func @transform_4(%arg0: i32) -> (i32, i32) {
    %c0_i32 = arith.constant 0 : i32
    %c0_i32_0 = arith.constant 0 : i32
    %c0_i32_1 = arith.constant 0 : i32
    return %c0_i32, %c0_i32_0 : i32, i32
  }
  func.func @transform_5(%arg0: i32) -> (i32, i32) {
    %c0_i32 = arith.constant 0 : i32
    %c0_i32_0 = arith.constant 0 : i32
    %c0_i32_1 = arith.constant 0 : i32
    return %c0_i32, %c0_i32_0 : i32, i32
  }
  func.func @transform_6(%arg0: i32) -> i32 {
    %c0_i32 = arith.constant 0 : i32
    %c0_i32_0 = arith.constant 0 : i32
    return %c0_i32 : i32
  }
  func.func @transform_7(%arg0: i32) -> (i32, i32) {
    %c0_i32 = arith.constant 0 : i32
    %c0_i32_0 = arith.constant 0 : i32
    return %arg0, %c0_i32 : i32, i32
  }
}

</mosaic_0001>

<llo_original>
// kernel: tpu_custom_call.1
$region0: #{tpu_custom_call.1}
  #allocation0 [shape = 'u32[]', space=smem, size = 0x4, offset = 0x4, fixed_abs, tag = 'smem constant byte address 0x4 - core index']
  #allocation1 [shape = 'u32[72,128]{1,0:T(1,128)}', space=vmem, size = 0x9000, scoped, tag = 'internal scratch']
  #allocation2 [shape = 'f32[1]{0:T(128)S(6)}', space=smem, size = 0x200, scoped, tag = 'scoped memory for tpu_custom_call.1']
  %s0 = inlined_call_operand.hbm [shape: f32[8,2352], index: 0, kind: input, shape index: {}]
  %s1 = inlined_call_operand.hbm [shape: f32[2352,128], index: 1, kind: input, shape index: {}]
  %s2 = inlined_call_operand.hbm [shape: f32[1,128], index: 2, kind: input, shape index: {}]
  %s3 = inlined_call_operand.vmem [shape: f32[128,64], index: 3, kind: input, shape index: {}]
  %s4 = inlined_call_operand.hbm [shape: f32[1,64], index: 4, kind: input, shape index: {}]
  %s5 = inlined_call_operand.hbm [shape: f32[1,64], index: 5, kind: input, shape index: {}]
  %s6 = inlined_call_operand.<no memory space> [shape: f32[1], index: 6, kind: input, shape index: {}]
  %s7 = inlined_call_operand.vmem [shape: f32[8,1], index: 7, kind: output, shape index: {}]
  %s8 = sld [smem:[#allocation0]]
  $region58: #{tpu_custom_call.1} parent=0
    _
  %s10 = ssub.s32 1, %s8
  %s11 = scalar_select 0, %s10, %s8
  %12 = sst [smem:[#allocation2]] %s6
  $region1: #{tpu_custom_call.1} parent=0
    #allocation3 [shape = 'u8[77824]{0}', space=vmem, size = 0x13000, scoped, tag = 'input window, operand 0, single buffered']
    #allocation4 [shape = 's32[1]{0}', space=sflag, size = 0x4, scoped, tag = 'scoped memory for tpu_custom_call.1']
    #allocation5 [shape = 'u8[1204224]{0}', space=vmem, size = 0x126000, scoped, tag = 'input window, operand 1, single buffered']
    #allocation6 [shape = 's32[1]{0}', space=sflag, size = 0x4, scoped, tag = 'scoped memory for tpu_custom_call.1']
    #allocation7 [shape = 'u8[512]{0}', space=vmem, size = 0x400, scoped, tag = 'input window, operand 2, single buffered']
    #allocation8 [shape = 'u8[512]{0}', space=vmem, size = 0x400, scoped, tag = 'input window, operand 4, single buffered']
    #allocation9 [shape = 's32[1]{0}', space=sflag, size = 0x4, scoped, tag = 'scoped memory for tpu_custom_call.1']
    #allocation10 [shape = 'u8[512]{0}', space=vmem, size = 0x400, scoped, tag = 'input window, operand 5, single buffered']
    %13 = vsyncpa [#allocation4], 0
    %14 = vsyncpa [#allocation6], 0
    %15 = vsyncpa [#allocation9], 0
    // Predicated region
    $region2: #{tpu_custom_call.1} parent=1 // pred_check
      _
    $region3: #{tpu_custom_call.1} parent=1 // pred_check_branch
      %17 = sbr.rel (0) target = $region5
    $region4: #{tpu_custom_call.1} parent=1 // pred_region
      %19 = vsyncadd [#allocation4], 0
      %s21 = sshll.u32 %s0, 4
      %s22 = int_to_ptr.hbm [resolvable:$true] %s21
      %s23 = sshll.u32 [#allocation3], 4
      %s24 = int_to_ptr.vmem [resolvable:$true] %s23
      %26 = dma.hbm_to_vmem [thread:$0]  %s22, 2432, %s24, [#allocation4]
    $region5: #{tpu_custom_call.1} parent=1 // pred_fallthru
      _
    // Predicated region
    $region6: #{tpu_custom_call.1} parent=1 // pred_check
      _
    $region7: #{tpu_custom_call.1} parent=1 // pred_check_branch
      %28 = sbr.rel (0) target = $region9
    $region8: #{tpu_custom_call.1} parent=1 // pred_region
      %30 = vsyncadd [#allocation6], 0
      %s31 = sshll.u32 %s1, 4
      %s32 = int_to_ptr.hbm [resolvable:$true] %s31
      %s33 = sshll.u32 [#allocation5], 4
      %s34 = int_to_ptr.vmem [resolvable:$true] %s33
      %39 = dma.hbm_to_vmem [thread:$0]  %s32, 37632, %s34, [#allocation6], 128, 128, 8
    $region9: #{tpu_custom_call.1} parent=1 // pred_fallthru
      _
    // Predicated region
    $region10: #{tpu_custom_call.1} parent=1 // pred_check
      _
    $region11: #{tpu_custom_call.1} parent=1 // pred_check_branch
      %41 = sbr.rel (0) target = $region13
    $region12: #{tpu_custom_call.1} parent=1 // pred_region
      %43 = vsyncadd [#allocation6], 0
      %s45 = sshll.u32 %s2, 4
      %s46 = int_to_ptr.hbm [resolvable:$true] %s45
      %s47 = sshll.u32 [#allocation7], 4
      %s48 = int_to_ptr.vmem [resolvable:$true] %s47
      %50 = dma.hbm_to_vmem [thread:$0]  %s46, 16, %s48, [#allocation6]
    $region13: #{tpu_custom_call.1} parent=1 // pred_fallthru
      _
    // Predicated region
    $region14: #{tpu_custom_call.1} parent=1 // pred_check
      _
    $region15: #{tpu_custom_call.1} parent=1 // pred_check_branch
      %52 = sbr.rel (0) target = $region17
    $region16: #{tpu_custom_call.1} parent=1 // pred_region
      _
    $region17: #{tpu_custom_call.1} parent=1 // pred_fallthru
      _
    // Predicated region
    $region18: #{tpu_custom_call.1} parent=1 // pred_check
      _
    $region19: #{tpu_custom_call.1} parent=1 // pred_check_branch
      %54 = sbr.rel (0) target = $region21
    $region20: #{tpu_custom_call.1} parent=1 // pred_region
      %56 = vsyncadd [#allocation9], 0
      %s58 = sshll.u32 %s4, 4
      %s59 = int_to_ptr.hbm [resolvable:$true] %s58
      %s60 = sshll.u32 [#allocation8], 4
      %s61 = int_to_ptr.vmem [resolvable:$true] %s60
      %63 = dma.hbm_to_vmem [thread:$0]  %s59, 16, %s61, [#allocation9]
    $region21: #{tpu_custom_call.1} parent=1 // pred_fallthru
      _
    // Predicated region
    $region22: #{tpu_custom_call.1} parent=1 // pred_check
      _
    $region23: #{tpu_custom_call.1} parent=1 // pred_check_branch
      %65 = sbr.rel (0) target = $region25
    $region24: #{tpu_custom_call.1} parent=1 // pred_region
      %67 = vsyncadd [#allocation9], 0
      %s69 = sshll.u32 %s5, 4
      %s70 = int_to_ptr.hbm [resolvable:$true] %s69
      %s71 = sshll.u32 [#allocation10], 4
      %s72 = int_to_ptr.vmem [resolvable:$true] %s71
      %74 = dma.hbm_to_vmem [thread:$0]  %s70, 16, %s72, [#allocation9]
    $region25: #{tpu_custom_call.1} parent=1 // pred_fallthru
      _
    // Predicated region
    $region26: #{tpu_custom_call.1} parent=1 // pred_check
      _
    $region27: #{tpu_custom_call.1} parent=1 // pred_check_branch
      %76 = sbr.rel (0) target = $region29
    $region28: #{tpu_custom_call.1} parent=1 // pred_region
      _
    $region29: #{tpu_custom_call.1} parent=1 // pred_fallthru
      _
    // Predicated region
    $region30: #{tpu_custom_call.1} parent=1 // pred_check
      _
    $region31: #{tpu_custom_call.1} parent=1 // pred_check_branch
      %78 = sbr.rel (0) target = $region33
    $region32: #{tpu_custom_call.1} parent=1 // pred_region
      %80 = dma.done [#allocation4], 2432
    $region33: #{tpu_custom_call.1} parent=1 // pred_fallthru
      _
    // Predicated region
    $region34: #{tpu_custom_call.1} parent=1 // pred_check
      _
    $region35: #{tpu_custom_call.1} parent=1 // pred_check_branch
      %82 = sbr.rel (0) target = $region37
    $region36: #{tpu_custom_call.1} parent=1 // pred_region
      %84 = dma.done [#allocation6], 37632
    $region37: #{tpu_custom_call.1} parent=1 // pred_fallthru
      _
    // Predicated region
    $region38: #{tpu_custom_call.1} parent=1 // pred_check
      _
    $region39: #{tpu_custom_call.1} parent=1 // pred_check_branch
      %86 = sbr.rel (0) target = $region41
    $region40: #{tpu_custom_call.1} parent=1 // pred_region
      %88 = dma.done [#allocation6], 16
    $region41: #{tpu_custom_call.1} parent=1 // pred_fallthru
      _
    // Predicated region
    $region42: #{tpu_custom_call.1} parent=1 // pred_check
      _
    $region43: #{tpu_custom_call.1} parent=1 // pred_check_branch
      %90 = sbr.rel (0) target = $region45
    $region44: #{tpu_custom_call.1} parent=1 // pred_region
      %92 = dma.done [#allocation9], 16
    $region45: #{tpu_custom_call.1} parent=1 // pred_fallthru
      _
    // Predicated region
    $region46: #{tpu_custom_call.1} parent=1 // pred_check
      _
    $region47: #{tpu_custom_call.1} parent=1 // pred_check_branch
      %94 = sbr.rel (0) target = $region49
    $region48: #{tpu_custom_call.1} parent=1 // pred_region
      %96 = dma.done [#allocation9], 16
    $region49: #{tpu_custom_call.1} parent=1 // pred_fallthru
      _
    %v97 = vld [vmem:[#allocation3] sm:$0xff]
    %v98 = vld [vmem:[#allocation3 + $0x8] sm:$0xff]
    %v99 = vld [vmem:[#allocation3 + $0x10] sm:$0xff]
    %v100 = vld [vmem:[#allocation3 + $0x18] sm:$0xff]
    %v101 = vld [vmem:[#allocation3 + $0x20] sm:$0xff]
    %v102 = vld [vmem:[#allocation3 + $0x28] sm:$0xff]
    %v103 = vld [vmem:[#allocation3 + $0x30] sm:$0xff]
    %v104 = vld [vmem:[#allocation3 + $0x38] sm:$0xff]
    %v105 = vld [vmem:[#allocation3 + $0x40] sm:$0xff]
    %v106 = vld [vmem:[#allocation3 + $0x48] sm:$0xff]
    %v107 = vld [vmem:[#allocation3 + $0x50] sm:$0xff]
    %v108 = vld [vmem:[#allocation3 + $0x58] sm:$0xff]
    %v109 = vld [vmem:[#allocation3 + $0x60] sm:$0xff]
    %v110 = vld [vmem:[#allocation3 + $0x68] sm:$0xff]
    %v111 = vld [vmem:[#allocation3 + $0x70] sm:$0xff]
    %v112 = vld [vmem:[#allocation3 + $0x78] sm:$0xff]
    %v113 = vld [vmem:[#allocation3 + $0x80] sm:$0xff]
    %v114 = vld [vmem:[#allocation3 + $0x88] sm:$0xff]
    %v115 = vld [vmem:[#allocation3 + $0x90] sm:$0xff]
    %v116 = vld [vmem:[#allocation5] sm:$0xff]
    %v117 = vld [vmem:[#allocation5 + $0x8] sm:$0xff]
    %v118 = vld [vmem:[#allocation5 + $0x10] sm:$0xff]
    %v119 = vld [vmem:[#allocation5 + $0x18] sm:$0xff]
    %v120 = vld [vmem:[#allocation5 + $0x20] sm:$0xff]
    %v121 = vld [vmem:[#allocation5 + $0x28] sm:$0xff]
    %v122 = vld [vmem:[#allocation5 + $0x30] sm:$0xff]
    %v123 = vld [vmem:[#allocation5 + $0x38] sm:$0xff]
    %v124 = vld [vmem:[#allocation5 + $0x40] sm:$0xff]
    %v125 = vld [vmem:[#allocation5 + $0x48] sm:$0xff]
    %v126 = vld [vmem:[#allocation5 + $0x50] sm:$0xff]
    %v127 = vld [vmem:[#allocation5 + $0x58] sm:$0xff]
    %v128 = vld [vmem:[#allocation5 + $0x60] sm:$0xff]
    %v129 = vld [vmem:[#allocation5 + $0x68] sm:$0xff]
    %v130 = vld [vmem:[#allocation5 + $0x70] sm:$0xff]
    %v131 = vld [vmem:[#allocation5 + $0x78] sm:$0xff]
    %v132 = vld [vmem:[#allocation5 + $0x80] sm:$0xff]
    %v133 = vld [vmem:[#allocation5 + $0x88] sm:$0xff]
    %v134 = vld [vmem:[#allocation5 + $0x90] sm:$0xff]
    %v135 = vld [vmem:[#allocation5 + $0x98] sm:$0xff]
    %v136 = vld [vmem:[#allocation5 + $0xa0] sm:$0xff]
    %v137 = vld [vmem:[#allocation5 + $0xa8] sm:$0xff]
    %v138 = vld [vmem:[#allocation5 + $0xb0] sm:$0xff]
    %v139 = vld [vmem:[#allocation5 + $0xb8] sm:$0xff]
    %v140 = vld [vmem:[#allocation5 + $0xc0] sm:$0xff]
    %v141 = vld [vmem:[#allocation5 + $0xc8] sm:$0xff]
    %v142 = vld [vmem:[#allocation5 + $0xd0] sm:$0xff]
    %v143 = vld [vmem:[#allocation5 + $0xd8] sm:$0xff]
    %v144 = vld [vmem:[#allocation5 + $0xe0] sm:$0xff]
    %v145 = vld [vmem:[#allocation5 + $0xe8] sm:$0xff]
    %v146 = vld [vmem:[#allocation5 + $0xf0] sm:$0xff]
    %v147 = vld [vmem:[#allocation5 + $0xf8] sm:$0xff]
    %v148 = vld [vmem:[#allocation5 + $0x100] sm:$0xff]
    %v149 = vld [vmem:[#allocation5 + $0x108] sm:$0xff]
    %v150 = vld [vmem:[#allocation5 + $0x110] sm:$0xff]
    %v151 = vld [vmem:[#allocation5 + $0x118] sm:$0xff]
    %v152 = vld [vmem:[#allocation5 + $0x120] sm:$0xff]
    %v153 = vld [vmem:[#allocation5 + $0x128] sm:$0xff]
    %v154 = vld [vmem:[#allocation5 + $0x130] sm:$0xff]
    %v155 = vld [vmem:[#allocation5 + $0x138] sm:$0xff]
    %v156 = vld [vmem:[#allocation5 + $0x140] sm:$0xff]
    %v157 = vld [vmem:[#allocation5 + $0x148] sm:$0xff]
    %v158 = vld [vmem:[#allocation5 + $0x150] sm:$0xff]
    %v159 = vld [vmem:[#allocation5 + $0x158] sm:$0xff]
    %v160 = vld [vmem:[#allocation5 + $0x160] sm:$0xff]
    %v161 = vld [vmem:[#allocation5 + $0x168] sm:$0xff]
    %v162 = vld [vmem:[#allocation5 + $0x170] sm:$0xff]
    %v163 = vld [vmem:[#allocation5 + $0x178] sm:$0xff]
    %v164 = vld [vmem:[#allocation5 + $0x180] sm:$0xff]
    %v165 = vld [vmem:[#allocation5 + $0x188] sm:$0xff]
    %v166 = vld [vmem:[#allocation5 + $0x190] sm:$0xff]
    %v167 = vld [vmem:[#allocation5 + $0x198] sm:$0xff]
    %v168 = vld [vmem:[#allocation5 + $0x1a0] sm:$0xff]
    %v169 = vld [vmem:[#allocation5 + $0x1a8] sm:$0xff]
    %v170 = vld [vmem:[#allocation5 + $0x1b0] sm:$0xff]
    %v171 = vld [vmem:[#allocation5 + $0x1b8] sm:$0xff]
    %v172 = vld [vmem:[#allocation5 + $0x1c0] sm:$0xff]
    %v173 = vld [vmem:[#allocation5 + $0x1c8] sm:$0xff]
    %v174 = vld [vmem:[#allocation5 + $0x1d0] sm:$0xff]
    %v175 = vld [vmem:[#allocation5 + $0x1d8] sm:$0xff]
    %v176 = vld [vmem:[#allocation5 + $0x1e0] sm:$0xff]
    %v177 = vld [vmem:[#allocation5 + $0x1e8] sm:$0xff]
    %v178 = vld [vmem:[#allocation5 + $0x1f0] sm:$0xff]
    %v179 = vld [vmem:[#allocation5 + $0x1f8] sm:$0xff]
    %v180 = vld [vmem:[#allocation5 + $0x200] sm:$0xff]
    %v181 = vld [vmem:[#allocation5 + $0x208] sm:$0xff]
    %v182 = vld [vmem:[#allocation5 + $0x210] sm:$0xff]
    %v183 = vld [vmem:[#allocation5 + $0x218] sm:$0xff]
    %v184 = vld [vmem:[#allocation5 + $0x220] sm:$0xff]
    %v185 = vld [vmem:[#allocation5 + $0x228] sm:$0xff]
    %v186 = vld [vmem:[#allocation5 + $0x230] sm:$0xff]
    %v187 = vld [vmem:[#allocation5 + $0x238] sm:$0xff]
    %v188 = vld [vmem:[#allocation5 + $0x240] sm:$0xff]
    %v189 = vld [vmem:[#allocation5 + $0x248] sm:$0xff]
    %v190 = vld [vmem:[#allocation5 + $0x250] sm:$0xff]
    %v191 = vld [vmem:[#allocation5 + $0x258] sm:$0xff]
    %v192 = vld [vmem:[#allocation5 + $0x260] sm:$0xff]
    %v193 = vld [vmem:[#allocation5 + $0x268] sm:$0xff]
    %v194 = vld [vmem:[#allocation5 + $0x270] sm:$0xff]
    %v195 = vld [vmem:[#allocation5 + $0x278] sm:$0xff]
    %v196 = vld [vmem:[#allocation5 + $0x280] sm:$0xff]
    %v197 = vld [vmem:[#allocation5 + $0x288] sm:$0xff]
    %v198 = vld [vmem:[#allocation5 + $0x290] sm:$0xff]
    %v199 = vld [vmem:[#allocation5 + $0x298] sm:$0xff]
    %v200 = vld [vmem:[#allocation5 + $0x2a0] sm:$0xff]
    %v201 = vld [vmem:[#allocation5 + $0x2a8] sm:$0xff]
    %v202 = vld [vmem:[#allocation5 + $0x2b0] sm:$0xff]
    %v203 = vld [vmem:[#allocation5 + $0x2b8] sm:$0xff]
    %v204 = vld [vmem:[#allocation5 + $0x2c0] sm:$0xff]
    %v205 = vld [vmem:[#allocation5 + $0x2c8] sm:$0xff]
    %v206 = vld [vmem:[#allocation5 + $0x2d0] sm:$0xff]
    %v207 = vld [vmem:[#allocation5 + $0x2d8] sm:$0xff]
    %v208 = vld [vmem:[#allocation5 + $0x2e0] sm:$0xff]
    %v209 = vld [vmem:[#allocation5 + $0x2e8] sm:$0xff]
    %v210 = vld [vmem:[#allocation5 + $0x2f0] sm:$0xff]
    %v211 = vld [vmem:[#allocation5 + $0x2f8] sm:$0xff]
    %v212 = vld [vmem:[#allocation5 + $0x300] sm:$0xff]
    %v213 = vld [vmem:[#allocation5 + $0x308] sm:$0xff]
    %v214 = vld [vmem:[#allocation5 + $0x310] sm:$0xff]
    %v215 = vld [vmem:[#allocation5 + $0x318] sm:$0xff]
    %v216 = vld [vmem:[#allocation5 + $0x320] sm:$0xff]
    %v217 = vld [vmem:[#allocation5 + $0x328] sm:$0xff]
    %v218 = vld [vmem:[#allocation5 + $0x330] sm:$0xff]
    %v219 = vld [vmem:[#allocation5 + $0x338] sm:$0xff]
    %v220 = vld [vmem:[#allocation5 + $0x340] sm:$0xff]
    %v221 = vld [vmem:[#allocation5 + $0x348] sm:$0xff]
    %v222 = vld [vmem:[#allocation5 + $0x350] sm:$0xff]
    %v223 = vld [vmem:[#allocation5 + $0x358] sm:$0xff]
    %v224 = vld [vmem:[#allocation5 + $0x360] sm:$0xff]
    %v225 = vld [vmem:[#allocation5 + $0x368] sm:$0xff]
    %v226 = vld [vmem:[#allocation5 + $0x370] sm:$0xff]
    %v227 = vld [vmem:[#allocation5 + $0x378] sm:$0xff]
    %v228 = vld [vmem:[#allocation5 + $0x380] sm:$0xff]
    %v229 = vld [vmem:[#allocation5 + $0x388] sm:$0xff]
    %v230 = vld [vmem:[#allocation5 + $0x390] sm:$0xff]
    %v231 = vld [vmem:[#allocation5 + $0x398] sm:$0xff]
    %v232 = vld [vmem:[#allocation5 + $0x3a0] sm:$0xff]
    %v233 = vld [vmem:[#allocation5 + $0x3a8] sm:$0xff]
    %v234 = vld [vmem:[#allocation5 + $0x3b0] sm:$0xff]
    %v235 = vld [vmem:[#allocation5 + $0x3b8] sm:$0xff]
    %v236 = vld [vmem:[#allocation5 + $0x3c0] sm:$0xff]
    %v237 = vld [vmem:[#allocation5 + $0x3c8] sm:$0xff]
    %v238 = vld [vmem:[#allocation5 + $0x3d0] sm:$0xff]
    %v239 = vld [vmem:[#allocation5 + $0x3d8] sm:$0xff]
    %v240 = vld [vmem:[#allocation5 + $0x3e0] sm:$0xff]
    %v241 = vld [vmem:[#allocation5 + $0x3e8] sm:$0xff]
    %v242 = vld [vmem:[#allocation5 + $0x3f0] sm:$0xff]
    %v243 = vld [vmem:[#allocation5 + $0x3f8] sm:$0xff]
    %v244 = vld [vmem:[#allocation5 + $0x400] sm:$0xff]
    %v245 = vld [vmem:[#allocation5 + $0x408] sm:$0xff]
    %v246 = vld [vmem:[#allocation5 + $0x410] sm:$0xff]
    %v247 = vld [vmem:[#allocation5 + $0x418] sm:$0xff]
    %v248 = vld [vmem:[#allocation5 + $0x420] sm:$0xff]
    %v249 = vld [vmem:[#allocation5 + $0x428] sm:$0xff]
    %v250 = vld [vmem:[#allocation5 + $0x430] sm:$0xff]
    %v251 = vld [vmem:[#allocation5 + $0x438] sm:$0xff]
    %v252 = vld [vmem:[#allocation5 + $0x440] sm:$0xff]
    %v253 = vld [vmem:[#allocation5 + $0x448] sm:$0xff]
    %v254 = vld [vmem:[#allocation5 + $0x450] sm:$0xff]
    %v255 = vld [vmem:[#allocation5 + $0x458] sm:$0xff]
    %v256 = vld [vmem:[#allocation5 + $0x460] sm:$0xff]
    %v257 = vld [vmem:[#allocation5 + $0x468] sm:$0xff]
    %v258 = vld [vmem:[#allocation5 + $0x470] sm:$0xff]
    %v259 = vld [vmem:[#allocation5 + $0x478] sm:$0xff]
    %v260 = vld [vmem:[#allocation5 + $0x480] sm:$0xff]
    %v261 = vld [vmem:[#allocation5 + $0x488] sm:$0xff]
    %v262 = vld [vmem:[#allocation5 + $0x490] sm:$0xff]
    %v263 = vld [vmem:[#allocation5 + $0x498] sm:$0xff]
    %v264 = vld [vmem:[#allocation5 + $0x4a0] sm:$0xff]
    %v265 = vld [vmem:[#allocation5 + $0x4a8] sm:$0xff]
    %v266 = vld [vmem:[#allocation5 + $0x4b0] sm:$0xff]
    %v267 = vld [vmem:[#allocation5 + $0x4b8] sm:$0xff]
    %v268 = vld [vmem:[#allocation5 + $0x4c0] sm:$0xff]
    %v269 = vld [vmem:[#allocation5 + $0x4c8] sm:$0xff]
    %v270 = vld [vmem:[#allocation5 + $0x4d0] sm:$0xff]
    %v271 = vld [vmem:[#allocation5 + $0x4d8] sm:$0xff]
    %v272 = vld [vmem:[#allocation5 + $0x4e0] sm:$0xff]
    %v273 = vld [vmem:[#allocation5 + $0x4e8] sm:$0xff]
    %v274 = vld [vmem:[#allocation5 + $0x4f0] sm:$0xff]
    %v275 = vld [vmem:[#allocation5 + $0x4f8] sm:$0xff]
    %v276 = vld [vmem:[#allocation5 + $0x500] sm:$0xff]
    %v277 = vld [vmem:[#allocation5 + $0x508] sm:$0xff]
    %v278 = vld [vmem:[#allocation5 + $0x510] sm:$0xff]
    %v279 = vld [vmem:[#allocation5 + $0x518] sm:$0xff]
    %v280 = vld [vmem:[#allocation5 + $0x520] sm:$0xff]
    %v281 = vld [vmem:[#allocation5 + $0x528] sm:$0xff]
    %v282 = vld [vmem:[#allocation5 + $0x530] sm:$0xff]
    %v283 = vld [vmem:[#allocation5 + $0x538] sm:$0xff]
    %v284 = vld [vmem:[#allocation5 + $0x540] sm:$0xff]
    %v285 = vld [vmem:[#allocation5 + $0x548] sm:$0xff]
    %v286 = vld [vmem:[#allocation5 + $0x550] sm:$0xff]
    %v287 = vld [vmem:[#allocation5 + $0x558] sm:$0xff]
    %v288 = vld [vmem:[#allocation5 + $0x560] sm:$0xff]
    %v289 = vld [vmem:[#allocation5 + $0x568] sm:$0xff]
    %v290 = vld [vmem:[#allocation5 + $0x570] sm:$0xff]
    %v291 = vld [vmem:[#allocation5 + $0x578] sm:$0xff]
    %v292 = vld [vmem:[#allocation5 + $0x580] sm:$0xff]
    %v293 = vld [vmem:[#allocation5 + $0x588] sm:$0xff]
    %v294 = vld [vmem:[#allocation5 + $0x590] sm:$0xff]
    %v295 = vld [vmem:[#allocation5 + $0x598] sm:$0xff]
    %v296 = vld [vmem:[#allocation5 + $0x5a0] sm:$0xff]
    %v297 = vld [vmem:[#allocation5 + $0x5a8] sm:$0xff]
    %v298 = vld [vmem:[#allocation5 + $0x5b0] sm:$0xff]
    %v299 = vld [vmem:[#allocation5 + $0x5b8] sm:$0xff]
    %v300 = vld [vmem:[#allocation5 + $0x5c0] sm:$0xff]
    %v301 = vld [vmem:[#allocation5 + $0x5c8] sm:$0xff]
    %v302 = vld [vmem:[#allocation5 + $0x5d0] sm:$0xff]
    %v303 = vld [vmem:[#allocation5 + $0x5d8] sm:$0xff]
    %v304 = vld [vmem:[#allocation5 + $0x5e0] sm:$0xff]
    %v305 = vld [vmem:[#allocation5 + $0x5e8] sm:$0xff]
    %v306 = vld [vmem:[#allocation5 + $0x5f0] sm:$0xff]
    %v307 = vld [vmem:[#allocation5 + $0x5f8] sm:$0xff]
    %v308 = vld [vmem:[#allocation5 + $0x600] sm:$0xff]
    %v309 = vld [vmem:[#allocation5 + $0x608] sm:$0xff]
    %v310 = vld [vmem:[#allocation5 + $0x610] sm:$0xff]
    %v311 = vld [vmem:[#allocation5 + $0x618] sm:$0xff]
    %v312 = vld [vmem:[#allocation5 + $0x620] sm:$0xff]
    %v313 = vld [vmem:[#allocation5 + $0x628] sm:$0xff]
    %v314 = vld [vmem:[#allocation5 + $0x630] sm:$0xff]
    %v315 = vld [vmem:[#allocation5 + $0x638] sm:$0xff]
    %v316 = vld [vmem:[#allocation5 + $0x640] sm:$0xff]
    %v317 = vld [vmem:[#allocation5 + $0x648] sm:$0xff]
    %v318 = vld [vmem:[#allocation5 + $0x650] sm:$0xff]
    %v319 = vld [vmem:[#allocation5 + $0x658] sm:$0xff]
    %v320 = vld [vmem:[#allocation5 + $0x660] sm:$0xff]
    %v321 = vld [vmem:[#allocation5 + $0x668] sm:$0xff]
    %v322 = vld [vmem:[#allocation5 + $0x670] sm:$0xff]
    %v323 = vld [vmem:[#allocation5 + $0x678] sm:$0xff]
    %v324 = vld [vmem:[#allocation5 + $0x680] sm:$0xff]
    %v325 = vld [vmem:[#allocation5 + $0x688] sm:$0xff]
    %v326 = vld [vmem:[#allocation5 + $0x690] sm:$0xff]
    %v327 = vld [vmem:[#allocation5 + $0x698] sm:$0xff]
    %v328 = vld [vmem:[#allocation5 + $0x6a0] sm:$0xff]
    %v329 = vld [vmem:[#allocation5 + $0x6a8] sm:$0xff]
    %v330 = vld [vmem:[#allocation5 + $0x6b0] sm:$0xff]
    %v331 = vld [vmem:[#allocation5 + $0x6b8] sm:$0xff]
    %v332 = vld [vmem:[#allocation5 + $0x6c0] sm:$0xff]
    %v333 = vld [vmem:[#allocation5 + $0x6c8] sm:$0xff]
    %v334 = vld [vmem:[#allocation5 + $0x6d0] sm:$0xff]
    %v335 = vld [vmem:[#allocation5 + $0x6d8] sm:$0xff]
    %v336 = vld [vmem:[#allocation5 + $0x6e0] sm:$0xff]
    %v337 = vld [vmem:[#allocation5 + $0x6e8] sm:$0xff]
    %v338 = vld [vmem:[#allocation5 + $0x6f0] sm:$0xff]
    %v339 = vld [vmem:[#allocation5 + $0x6f8] sm:$0xff]
    %v340 = vld [vmem:[#allocation5 + $0x700] sm:$0xff]
    %v341 = vld [vmem:[#allocation5 + $0x708] sm:$0xff]
    %v342 = vld [vmem:[#allocation5 + $0x710] sm:$0xff]
    %v343 = vld [vmem:[#allocation5 + $0x718] sm:$0xff]
    %v344 = vld [vmem:[#allocation5 + $0x720] sm:$0xff]
    %v345 = vld [vmem:[#allocation5 + $0x728] sm:$0xff]
    %v346 = vld [vmem:[#allocation5 + $0x730] sm:$0xff]
    %v347 = vld [vmem:[#allocation5 + $0x738] sm:$0xff]
    %v348 = vld [vmem:[#allocation5 + $0x740] sm:$0xff]
    %v349 = vld [vmem:[#allocation5 + $0x748] sm:$0xff]
    %v350 = vld [vmem:[#allocation5 + $0x750] sm:$0xff]
    %v351 = vld [vmem:[#allocation5 + $0x758] sm:$0xff]
    %v352 = vld [vmem:[#allocation5 + $0x760] sm:$0xff]
    %v353 = vld [vmem:[#allocation5 + $0x768] sm:$0xff]
    %v354 = vld [vmem:[#allocation5 + $0x770] sm:$0xff]
    %v355 = vld [vmem:[#allocation5 + $0x778] sm:$0xff]
    %v356 = vld [vmem:[#allocation5 + $0x780] sm:$0xff]
    %v357 = vld [vmem:[#allocation5 + $0x788] sm:$0xff]
    %v358 = vld [vmem:[#allocation5 + $0x790] sm:$0xff]
    %v359 = vld [vmem:[#allocation5 + $0x798] sm:$0xff]
    %v360 = vld [vmem:[#allocation5 + $0x7a0] sm:$0xff]
    %v361 = vld [vmem:[#allocation5 + $0x7a8] sm:$0xff]
    %v362 = vld [vmem:[#allocation5 + $0x7b0] sm:$0xff]
    %v363 = vld [vmem:[#allocation5 + $0x7b8] sm:$0xff]
    %v364 = vld [vmem:[#allocation5 + $0x7c0] sm:$0xff]
    %v365 = vld [vmem:[#allocation5 + $0x7c8] sm:$0xff]
    %v366 = vld [vmem:[#allocation5 + $0x7d0] sm:$0xff]
    %v367 = vld [vmem:[#allocation5 + $0x7d8] sm:$0xff]
    %v368 = vld [vmem:[#allocation5 + $0x7e0] sm:$0xff]
    %v369 = vld [vmem:[#allocation5 + $0x7e8] sm:$0xff]
    %v370 = vld [vmem:[#allocation5 + $0x7f0] sm:$0xff]
    %v371 = vld [vmem:[#allocation5 + $0x7f8] sm:$0xff]
    %v372 = vld [vmem:[#allocation5 + $0x800] sm:$0xff]
    %v373 = vld [vmem:[#allocation5 + $0x808] sm:$0xff]
    %v374 = vld [vmem:[#allocation5 + $0x810] sm:$0xff]
    %v375 = vld [vmem:[#allocation5 + $0x818] sm:$0xff]
    %v376 = vld [vmem:[#allocation5 + $0x820] sm:$0xff]
    %v377 = vld [vmem:[#allocation5 + $0x828] sm:$0xff]
    %v378 = vld [vmem:[#allocation5 + $0x830] sm:$0xff]
    %v379 = vld [vmem:[#allocation5 + $0x838] sm:$0xff]
    %v380 = vld [vmem:[#allocation5 + $0x840] sm:$0xff]
    %v381 = vld [vmem:[#allocation5 + $0x848] sm:$0xff]
    %v382 = vld [vmem:[#allocation5 + $0x850] sm:$0xff]
    %v383 = vld [vmem:[#allocation5 + $0x858] sm:$0xff]
    %v384 = vld [vmem:[#allocation5 + $0x860] sm:$0xff]
    %v385 = vld [vmem:[#allocation5 + $0x868] sm:$0xff]
    %v386 = vld [vmem:[#allocation5 + $0x870] sm:$0xff]
    %v387 = vld [vmem:[#allocation5 + $0x878] sm:$0xff]
    %v388 = vld [vmem:[#allocation5 + $0x880] sm:$0xff]
    %v389 = vld [vmem:[#allocation5 + $0x888] sm:$0xff]
    %v390 = vld [vmem:[#allocation5 + $0x890] sm:$0xff]
    %v391 = vld [vmem:[#allocation5 + $0x898] sm:$0xff]
    %v392 = vld [vmem:[#allocation5 + $0x8a0] sm:$0xff]
    %v393 = vld [vmem:[#allocation5 + $0x8a8] sm:$0xff]
    %v394 = vld [vmem:[#allocation5 + $0x8b0] sm:$0xff]
    %v395 = vld [vmem:[#allocation5 + $0x8b8] sm:$0xff]
    %v396 = vld [vmem:[#allocation5 + $0x8c0] sm:$0xff]
    %v397 = vld [vmem:[#allocation5 + $0x8c8] sm:$0xff]
    %v398 = vld [vmem:[#allocation5 + $0x8d0] sm:$0xff]
    %v399 = vld [vmem:[#allocation5 + $0x8d8] sm:$0xff]
    %v400 = vld [vmem:[#allocation5 + $0x8e0] sm:$0xff]
    %v401 = vld [vmem:[#allocation5 + $0x8e8] sm:$0xff]
    %v402 = vld [vmem:[#allocation5 + $0x8f0] sm:$0xff]
    %v403 = vld [vmem:[#allocation5 + $0x8f8] sm:$0xff]
    %v404 = vld [vmem:[#allocation5 + $0x900] sm:$0xff]
    %v405 = vld [vmem:[#allocation5 + $0x908] sm:$0xff]
    %v406 = vld [vmem:[#allocation5 + $0x910] sm:$0xff]
    %v407 = vld [vmem:[#allocation5 + $0x918] sm:$0xff]
    %v408 = vld [vmem:[#allocation5 + $0x920] sm:$0xff]
    %v409 = vld [vmem:[#allocation5 + $0x928] sm:$0xff]
    %v410 = vld [vmem:[#allocation7] sm:$0x1]
    %v412 = vperm.slane %v410, 0
    %vm414 = vcmask 392192
    %v416 = vsel %vm414, %v115, 0
    %418 = vmatpush.msra.mxu0 %v131
    %419 = vmatpush.msra.mxu0 %v130
    %420 = vmatpush.msra.mxu0 %v129
    %421 = vmatpush.msra.mxu0 %v128
    %422 = vmatpush.msra.mxu0 %v127
    %423 = vmatpush.msra.mxu0 %v126
    %424 = vmatpush.msra.mxu0 %v125
    %425 = vmatpush.msra.mxu0 %v124
    %426 = vmatpush.msra.mxu0 %v123
    %427 = vmatpush.msra.mxu0 %v122
    %428 = vmatpush.msra.mxu0 %v121
    %429 = vmatpush.msra.mxu0 %v120
    %430 = vmatpush.msra.mxu0 %v119
    %431 = vmatpush.msra.mxu0 %v118
    %432 = vmatpush.msra.mxu0 %v117
    %433 = vmatpush.msra.mxu0 %v116
    %434 = vmatmul.f32.gmra.mxu0 %v97
    %v435 = vpop.f32.mrf.mxu0
    %v436 = vadd.f32 %v412, %v435
    %437 = vdwg.mxu0
    %438 = vmatpush.msra.mxu0 %v147
    %439 = vmatpush.msra.mxu0 %v146
    %440 = vmatpush.msra.mxu0 %v145
    %441 = vmatpush.msra.mxu0 %v144
    %442 = vmatpush.msra.mxu0 %v143
    %443 = vmatpush.msra.mxu0 %v142
    %444 = vmatpush.msra.mxu0 %v141
    %445 = vmatpush.msra.mxu0 %v140
    %446 = vmatpush.msra.mxu0 %v139
    %447 = vmatpush.msra.mxu0 %v138
    %448 = vmatpush.msra.mxu0 %v137
    %449 = vmatpush.msra.mxu0 %v136
    %450 = vmatpush.msra.mxu0 %v135
    %451 = vmatpush.msra.mxu0 %v134
    %452 = vmatpush.msra.mxu0 %v133
    %453 = vmatpush.msra.mxu0 %v132
    %454 = vmatmul.f32.gmra.mxu0 %v98
    %v455 = vpop.f32.mrf.mxu0
    %v456 = vadd.f32 %v436, %v455
    %457 = vdwg.mxu0
    %458 = vmatpush.msra.mxu0 %v163
    %459 = vmatpush.msra.mxu0 %v162
    %460 = vmatpush.msra.mxu0 %v161
    %461 = vmatpush.msra.mxu0 %v160
    %462 = vmatpush.msra.mxu0 %v159
    %463 = vmatpush.msra.mxu0 %v158
    %464 = vmatpush.msra.mxu0 %v157
    %465 = vmatpush.msra.mxu0 %v156
    %466 = vmatpush.msra.mxu0 %v155
    %467 = vmatpush.msra.mxu0 %v154
    %468 = vmatpush.msra.mxu0 %v153
    %469 = vmatpush.msra.mxu0 %v152
    %470 = vmatpush.msra.mxu0 %v151
    %471 = vmatpush.msra.mxu0 %v150
    %472 = vmatpush.msra.mxu0 %v149
    %473 = vmatpush.msra.mxu0 %v148
    %474 = vmatmul.f32.gmra.mxu0 %v99
    %v475 = vpop.f32.mrf.mxu0
    %v476 = vadd.f32 %v456, %v475
    %477 = vdwg.mxu0
    %478 = vmatpush.msra.mxu0 %v179
    %479 = vmatpush.msra.mxu0 %v178
    %480 = vmatpush.msra.mxu0 %v177
    %481 = vmatpush.msra.mxu0 %v176
    %482 = vmatpush.msra.mxu0 %v175
    %483 = vmatpush.msra.mxu0 %v174
    %484 = vmatpush.msra.mxu0 %v173
    %485 = vmatpush.msra.mxu0 %v172
    %486 = vmatpush.msra.mxu0 %v171
    %487 = vmatpush.msra.mxu0 %v170
    %488 = vmatpush.msra.mxu0 %v169
    %489 = vmatpush.msra.mxu0 %v168
    %490 = vmatpush.msra.mxu0 %v167
    %491 = vmatpush.msra.mxu0 %v166
    %492 = vmatpush.msra.mxu0 %v165
    %493 = vmatpush.msra.mxu0 %v164
    %494 = vmatmul.f32.gmra.mxu0 %v100
    %v495 = vpop.f32.mrf.mxu0
    %v496 = vadd.f32 %v476, %v495
    %497 = vdwg.mxu0
    %498 = vmatpush.msra.mxu0 %v195
    %499 = vmatpush.msra.mxu0 %v194
    %500 = vmatpush.msra.mxu0 %v193
    %501 = vmatpush.msra.mxu0 %v192
    %502 = vmatpush.msra.mxu0 %v191
    %503 = vmatpush.msra.mxu0 %v190
    %504 = vmatpush.msra.mxu0 %v189
    %505 = vmatpush.msra.mxu0 %v188
    %506 = vmatpush.msra.mxu0 %v187
    %507 = vmatpush.msra.mxu0 %v186
    %508 = vmatpush.msra.mxu0 %v185
    %509 = vmatpush.msra.mxu0 %v184
    %510 = vmatpush.msra.mxu0 %v183
    %511 = vmatpush.msra.mxu0 %v182
    %512 = vmatpush.msra.mxu0 %v181
    %513 = vmatpush.msra.mxu0 %v180
    %514 = vmatmul.f32.gmra.mxu0 %v101
    %v515 = vpop.f32.mrf.mxu0
    %v516 = vadd.f32 %v496, %v515
    %517 = vdwg.mxu0
    %518 = vmatpush.msra.mxu0 %v211
    %519 = vmatpush.msra.mxu0 %v210
    %520 = vmatpush.msra.mxu0 %v209
    %521 = vmatpush.msra.mxu0 %v208
    %522 = vmatpush.msra.mxu0 %v207
    %523 = vmatpush.msra.mxu0 %v206
    %524 = vmatpush.msra.mxu0 %v205
    %525 = vmatpush.msra.mxu0 %v204
    %526 = vmatpush.msra.mxu0 %v203
    %527 = vmatpush.msra.mxu0 %v202
    %528 = vmatpush.msra.mxu0 %v201
    %529 = vmatpush.msra.mxu0 %v200
    %530 = vmatpush.msra.mxu0 %v199
    %531 = vmatpush.msra.mxu0 %v198
    %532 = vmatpush.msra.mxu0 %v197
    %533 = vmatpush.msra.mxu0 %v196
    %534 = vmatmul.f32.gmra.mxu0 %v102
    %v535 = vpop.f32.mrf.mxu0
    %v536 = vadd.f32 %v516, %v535
    %537 = vdwg.mxu0
    %538 = vmatpush.msra.mxu0 %v227
    %539 = vmatpush.msra.mxu0 %v226
    %540 = vmatpush.msra.mxu0 %v225
    %541 = vmatpush.msra.mxu0 %v224
    %542 = vmatpush.msra.mxu0 %v223
    %543 = vmatpush.msra.mxu0 %v222
    %544 = vmatpush.msra.mxu0 %v221
    %545 = vmatpush.msra.mxu0 %v220
    %546 = vmatpush.msra.mxu0 %v219
    %547 = vmatpush.msra.mxu0 %v218
    %548 = vmatpush.msra.mxu0 %v217
    %549 = vmatpush.msra.mxu0 %v216
    %550 = vmatpush.msra.mxu0 %v215
    %551 = vmatpush.msra.mxu0 %v214
    %552 = vmatpush.msra.mxu0 %v213
    %553 = vmatpush.msra.mxu0 %v212
    %554 = vmatmul.f32.gmra.mxu0 %v103
    %v555 = vpop.f32.mrf.mxu0
    %v556 = vadd.f32 %v536, %v555
    %557 = vdwg.mxu0
    %558 = vmatpush.msra.mxu0 %v243
    %559 = vmatpush.msra.mxu0 %v242
    %560 = vmatpush.msra.mxu0 %v241
    %561 = vmatpush.msra.mxu0 %v240
    %562 = vmatpush.msra.mxu0 %v239
    %563 = vmatpush.msra.mxu0 %v238
    %564 = vmatpush.msra.mxu0 %v237
    %565 = vmatpush.msra.mxu0 %v236
    %566 = vmatpush.msra.mxu0 %v235
    %567 = vmatpush.msra.mxu0 %v234
    %568 = vmatpush.msra.mxu0 %v233
    %569 = vmatpush.msra.mxu0 %v232
    %570 = vmatpush.msra.mxu0 %v231
    %571 = vmatpush.msra.mxu0 %v230
    %572 = vmatpush.msra.mxu0 %v229
    %573 = vmatpush.msra.mxu0 %v228
    %574 = vmatmul.f32.gmra.mxu0 %v104
    %v575 = vpop.f32.mrf.mxu0
    %v576 = vadd.f32 %v556, %v575
    %577 = vdwg.mxu0
    %578 = vmatpush.msra.mxu0 %v259
    %579 = vmatpush.msra.mxu0 %v258
    %580 = vmatpush.msra.mxu0 %v257
    %581 = vmatpush.msra.mxu0 %v256
    %582 = vmatpush.msra.mxu0 %v255
    %583 = vmatpush.msra.mxu0 %v254
    %584 = vmatpush.msra.mxu0 %v253
    %585 = vmatpush.msra.mxu0 %v252
    %586 = vmatpush.msra.mxu0 %v251
    %587 = vmatpush.msra.mxu0 %v250
    %588 = vmatpush.msra.mxu0 %v249
    %589 = vmatpush.msra.mxu0 %v248
    %590 = vmatpush.msra.mxu0 %v247
    %591 = vmatpush.msra.mxu0 %v246
    %592 = vmatpush.msra.mxu0 %v245
    %593 = vmatpush.msra.mxu0 %v244
    %594 = vmatmul.f32.gmra.mxu0 %v105
    %v595 = vpop.f32.mrf.mxu0
    %v596 = vadd.f32 %v576, %v595
    %597 = vdwg.mxu0
    %598 = vmatpush.msra.mxu0 %v275
    %599 = vmatpush.msra.mxu0 %v274
    %600 = vmatpush.msra.mxu0 %v273
    %601 = vmatpush.msra.mxu0 %v272
    %602 = vmatpush.msra.mxu0 %v271
    %603 = vmatpush.msra.mxu0 %v270
    %604 = vmatpush.msra.mxu0 %v269
    %605 = vmatpush.msra.mxu0 %v268
    %606 = vmatpush.msra.mxu0 %v267
    %607 = vmatpush.msra.mxu0 %v266
    %608 = vmatpush.msra.mxu0 %v265
    %609 = vmatpush.msra.mxu0 %v264
    %610 = vmatpush.msra.mxu0 %v263
    %611 = vmatpush.msra.mxu0 %v262
    %612 = vmatpush.msra.mxu0 %v261
    %613 = vmatpush.msra.mxu0 %v260
    %614 = vmatmul.f32.gmra.mxu0 %v106
    %v615 = vpop.f32.mrf.mxu0
    %v616 = vadd.f32 %v596, %v615
    %617 = vdwg.mxu0
    %618 = vmatpush.msra.mxu0 %v291
    %619 = vmatpush.msra.mxu0 %v290
    %620 = vmatpush.msra.mxu0 %v289
    %621 = vmatpush.msra.mxu0 %v288
    %622 = vmatpush.msra.mxu0 %v287
    %623 = vmatpush.msra.mxu0 %v286
    %624 = vmatpush.msra.mxu0 %v285
    %625 = vmatpush.msra.mxu0 %v284
    %626 = vmatpush.msra.mxu0 %v283
    %627 = vmatpush.msra.mxu0 %v282
    %628 = vmatpush.msra.mxu0 %v281
    %629 = vmatpush.msra.mxu0 %v280
    %630 = vmatpush.msra.mxu0 %v279
    %631 = vmatpush.msra.mxu0 %v278
    %632 = vmatpush.msra.mxu0 %v277
    %633 = vmatpush.msra.mxu0 %v276
    %634 = vmatmul.f32.gmra.mxu0 %v107
    %v635 = vpop.f32.mrf.mxu0
    %v636 = vadd.f32 %v616, %v635
    %637 = vdwg.mxu0
    %638 = vmatpush.msra.mxu0 %v307
    %639 = vmatpush.msra.mxu0 %v306
    %640 = vmatpush.msra.mxu0 %v305
    %641 = vmatpush.msra.mxu0 %v304
    %642 = vmatpush.msra.mxu0 %v303
    %643 = vmatpush.msra.mxu0 %v302
    %644 = vmatpush.msra.mxu0 %v301
    %645 = vmatpush.msra.mxu0 %v300
    %646 = vmatpush.msra.mxu0 %v299
    %647 = vmatpush.msra.mxu0 %v298
    %648 = vmatpush.msra.mxu0 %v297
    %649 = vmatpush.msra.mxu0 %v296
    %650 = vmatpush.msra.mxu0 %v295
    %651 = vmatpush.msra.mxu0 %v294
    %652 = vmatpush.msra.mxu0 %v293
    %653 = vmatpush.msra.mxu0 %v292
    %654 = vmatmul.f32.gmra.mxu0 %v108
    %v655 = vpop.f32.mrf.mxu0
    %v656 = vadd.f32 %v636, %v655
    %657 = vdwg.mxu0
    %658 = vmatpush.msra.mxu0 %v323
    %659 = vmatpush.msra.mxu0 %v322
    %660 = vmatpush.msra.mxu0 %v321
    %661 = vmatpush.msra.mxu0 %v320
    %662 = vmatpush.msra.mxu0 %v319
    %663 = vmatpush.msra.mxu0 %v318
    %664 = vmatpush.msra.mxu0 %v317
    %665 = vmatpush.msra.mxu0 %v316
    %666 = vmatpush.msra.mxu0 %v315
    %667 = vmatpush.msra.mxu0 %v314
    %668 = vmatpush.msra.mxu0 %v313
    %669 = vmatpush.msra.mxu0 %v312
    %670 = vmatpush.msra.mxu0 %v311
    %671 = vmatpush.msra.mxu0 %v310
    %672 = vmatpush.msra.mxu0 %v309
    %673 = vmatpush.msra.mxu0 %v308
    %674 = vmatmul.f32.gmra.mxu0 %v109
    %v675 = vpop.f32.mrf.mxu0
    %v676 = vadd.f32 %v656, %v675
    %677 = vdwg.mxu0
    %678 = vmatpush.msra.mxu0 %v339
    %679 = vmatpush.msra.mxu0 %v338
    %680 = vmatpush.msra.mxu0 %v337
    %681 = vmatpush.msra.mxu0 %v336
    %682 = vmatpush.msra.mxu0 %v335
    %683 = vmatpush.msra.mxu0 %v334
    %684 = vmatpush.msra.mxu0 %v333
    %685 = vmatpush.msra.mxu0 %v332
    %686 = vmatpush.msra.mxu0 %v331
    %687 = vmatpush.msra.mxu0 %v330
    %688 = vmatpush.msra.mxu0 %v329
    %689 = vmatpush.msra.mxu0 %v328
    %690 = vmatpush.msra.mxu0 %v327
    %691 = vmatpush.msra.mxu0 %v326
    %692 = vmatpush.msra.mxu0 %v325
    %693 = vmatpush.msra.mxu0 %v324
    %694 = vmatmul.f32.gmra.mxu0 %v110
    %v695 = vpop.f32.mrf.mxu0
    %v696 = vadd.f32 %v676, %v695
    %697 = vdwg.mxu0
    %698 = vmatpush.msra.mxu0 %v355
    %699 = vmatpush.msra.mxu0 %v354
    %700 = vmatpush.msra.mxu0 %v353
    %701 = vmatpush.msra.mxu0 %v352
    %702 = vmatpush.msra.mxu0 %v351
    %703 = vmatpush.msra.mxu0 %v350
    %704 = vmatpush.msra.mxu0 %v349
    %705 = vmatpush.msra.mxu0 %v348
    %706 = vmatpush.msra.mxu0 %v347
    %707 = vmatpush.msra.mxu0 %v346
    %708 = vmatpush.msra.mxu0 %v345
    %709 = vmatpush.msra.mxu0 %v344
    %710 = vmatpush.msra.mxu0 %v343
    %711 = vmatpush.msra.mxu0 %v342
    %712 = vmatpush.msra.mxu0 %v341
    %713 = vmatpush.msra.mxu0 %v340
    %714 = vmatmul.f32.gmra.mxu0 %v111
    %v715 = vpop.f32.mrf.mxu0
    %v716 = vadd.f32 %v696, %v715
    %717 = vdwg.mxu0
    %718 = vmatpush.msra.mxu0 %v371
    %719 = vmatpush.msra.mxu0 %v370
    %720 = vmatpush.msra.mxu0 %v369
    %721 = vmatpush.msra.mxu0 %v368
    %722 = vmatpush.msra.mxu0 %v367
    %723 = vmatpush.msra.mxu0 %v366
    %724 = vmatpush.msra.mxu0 %v365
    %725 = vmatpush.msra.mxu0 %v364
    %726 = vmatpush.msra.mxu0 %v363
    %727 = vmatpush.msra.mxu0 %v362
    %728 = vmatpush.msra.mxu0 %v361
    %729 = vmatpush.msra.mxu0 %v360
    %730 = vmatpush.msra.mxu0 %v359
    %731 = vmatpush.msra.mxu0 %v358
    %732 = vmatpush.msra.mxu0 %v357
    %733 = vmatpush.msra.mxu0 %v356
    %734 = vmatmul.f32.gmra.mxu0 %v112
    %v735 = vpop.f32.mrf.mxu0
    %v736 = vadd.f32 %v716, %v735
    %737 = vdwg.mxu0
    %738 = vmatpush.msra.mxu0 %v387
    %739 = vmatpush.msra.mxu0 %v386
    %740 = vmatpush.msra.mxu0 %v385
    %741 = vmatpush.msra.mxu0 %v384
    %742 = vmatpush.msra.mxu0 %v383
    %743 = vmatpush.msra.mxu0 %v382
    %744 = vmatpush.msra.mxu0 %v381
    %745 = vmatpush.msra.mxu0 %v380
    %746 = vmatpush.msra.mxu0 %v379
    %747 = vmatpush.msra.mxu0 %v378
    %748 = vmatpush.msra.mxu0 %v377
    %749 = vmatpush.msra.mxu0 %v376
    %750 = vmatpush.msra.mxu0 %v375
    %751 = vmatpush.msra.mxu0 %v374
    %752 = vmatpush.msra.mxu0 %v373
    %753 = vmatpush.msra.mxu0 %v372
    %754 = vmatmul.f32.gmra.mxu0 %v113
    %v755 = vpop.f32.mrf.mxu0
    %v756 = vadd.f32 %v736, %v755
    %757 = vdwg.mxu0
    %758 = vmatpush.msra.mxu0 %v403
    %759 = vmatpush.msra.mxu0 %v402
    %760 = vmatpush.msra.mxu0 %v401
    %761 = vmatpush.msra.mxu0 %v400
    %762 = vmatpush.msra.mxu0 %v399
    %763 = vmatpush.msra.mxu0 %v398
    %764 = vmatpush.msra.mxu0 %v397
    %765 = vmatpush.msra.mxu0 %v396
    %766 = vmatpush.msra.mxu0 %v395
    %767 = vmatpush.msra.mxu0 %v394
    %768 = vmatpush.msra.mxu0 %v393
    %769 = vmatpush.msra.mxu0 %v392
    %770 = vmatpush.msra.mxu0 %v391
    %771 = vmatpush.msra.mxu0 %v390
    %772 = vmatpush.msra.mxu0 %v389
    %773 = vmatpush.msra.mxu0 %v388
    %774 = vmatmul.f32.gmra.mxu0 %v114
    %v775 = vpop.f32.mrf.mxu0
    %v776 = vadd.f32 %v756, %v775
    %777 = vdwg.mxu0
    %778 = vmatpush.msra.mxu0 0.0
    %779 = vmatpush.msra.mxu0 0.0
    %780 = vmatpush.msra.mxu0 0.0
    %781 = vmatpush.msra.mxu0 0.0
    %782 = vmatpush.msra.mxu0 0.0
    %783 = vmatpush.msra.mxu0 0.0
    %784 = vmatpush.msra.mxu0 0.0
    %785 = vmatpush.msra.mxu0 0.0
    %786 = vmatpush.msra.mxu0 0.0
    %787 = vmatpush.msra.mxu0 0.0
    %788 = vmatpush.msra.mxu0 %v409
    %789 = vmatpush.msra.mxu0 %v408
    %790 = vmatpush.msra.mxu0 %v407
    %791 = vmatpush.msra.mxu0 %v406
    %792 = vmatpush.msra.mxu0 %v405
    %793 = vmatpush.msra.mxu0 %v404
    %794 = vmatmul.f32.gmra.mxu0 %v416
    %v795 = vpop.f32.mrf.mxu0
    %v796 = vadd.f32 %v776, %v795
    %797 = vdwg.mxu0
    %v798 = vmax.f32 %v796, 0.0
    %v799 = vld [vmem:[%s3] sm:$0xff]
    %v800 = vld [vmem:[%s3 + $0x8] sm:$0xff]
    %v801 = vld [vmem:[%s3 + $0x10] sm:$0xff]
    %v802 = vld [vmem:[%s3 + $0x18] sm:$0xff]
    %v803 = vld [vmem:[%s3 + $0x20] sm:$0xff]
    %v804 = vld [vmem:[%s3 + $0x28] sm:$0xff]
    %v805 = vld [vmem:[%s3 + $0x30] sm:$0xff]
    %v806 = vld [vmem:[%s3 + $0x38] sm:$0xff]
    %v807 = vld [vmem:[%s3 + $0x40] sm:$0xff]
    %v808 = vld [vmem:[%s3 + $0x48] sm:$0xff]
    %v809 = vld [vmem:[%s3 + $0x50] sm:$0xff]
    %v810 = vld [vmem:[%s3 + $0x58] sm:$0xff]
    %v811 = vld [vmem:[%s3 + $0x60] sm:$0xff]
    %v812 = vld [vmem:[%s3 + $0x68] sm:$0xff]
    %v813 = vld [vmem:[%s3 + $0x70] sm:$0xff]
    %v814 = vld [vmem:[%s3 + $0x78] sm:$0xff]
    %v815 = vld [vmem:[#allocation8] sm:$0x1]
    %v817 = vperm.slane %v815, 0
    %819 = vmatpush.msra.mxu0 %v814
    %820 = vmatpush.msra.mxu0 %v813
    %821 = vmatpush.msra.mxu0 %v812
    %822 = vmatpush.msra.mxu0 %v811
    %823 = vmatpush.msra.mxu0 %v810
    %824 = vmatpush.msra.mxu0 %v809
    %825 = vmatpush.msra.mxu0 %v808
    %826 = vmatpush.msra.mxu0 %v807
    %827 = vmatpush.msra.mxu0 %v806
    %828 = vmatpush.msra.mxu0 %v805
    %829 = vmatpush.msra.mxu0 %v804
    %830 = vmatpush.msra.mxu0 %v803
    %831 = vmatpush.msra.mxu0 %v802
    %832 = vmatpush.msra.mxu0 %v801
    %833 = vmatpush.msra.mxu0 %v800
    %834 = vmatpush.msra.mxu0 %v799
    %835 = vmatmul.f32.gmra.mxu0 %v798
    %v836 = vpop.f32.mrf.mxu0
    %v837 = vadd.f32 %v817, %v836
    %838 = vdwg.mxu0
    %v839 = vmax.f32 %v837, 0.0
    %v840 = vld [vmem:[#allocation10] sm:$0x1]
    %v842 = vperm.slane %v840, 0
    %v844 = vmul.f32 %v839, %v842
    %vm845 = vcmask 523264
    %v846 = vsel %vm845, %v844, 0.0
    %847 = vadd.xlane.f32.xlu0 %v846
    %v848 = vpop.xlane.xlu0 %847
    %s849 = sld [smem:[#allocation2]]
    %v850 = vstv %s849
    %v851 = vadd.f32 %v848, %v850
    %v852 = vxor.u32 %v851, 2147483648
    %v853 = vmul.f32 %v852, 1.442695
    %v854 = vpow.pop %v853
    %v855 = vadd.f32 %v854, 1.0
    %v856 = vrcp.pop %v855
    %v857 = vmul.f32 %v855, %v856
    %v858 = vsub.f32 1.0, %v857
    %v859 = vmul.f32 %v856, %v858
    %v860 = vadd.f32 %v856, %v859
    %vm861 = vweird.f32 %v855
    %vm862 = vweird.f32 %v856
    %vm863 = vmor %vm861, %vm862
    %v864 = vsel %vm863, %v856, %v860
    %v865 = vand.u32 2147483647, %v855
    %vm866 = vcmp.eq.f32.partialorder %v865, 8.507059e+37
    %v867 = vand.u32 %v855, 2147483648
    %v868 = vor.u32 1.1754944e-38, %v867
    %v869 = vsel %vm866, %v868, %v864
    %v870 = vmul.f32 1.0, %v869
    %vm871 = vcmask 7168
    %872 = vst.msk [vmem:[%s7] sm:$0xff] %vm871, %v870
    // Predicated region
    $region50: #{tpu_custom_call.1} parent=1 // pred_check
      _
    $region51: #{tpu_custom_call.1} parent=1 // pred_check_branch
      %874 = sbr.rel (0) target = $region53
    $region52: #{tpu_custom_call.1} parent=1 // pred_region
      _
    $region53: #{tpu_custom_call.1} parent=1 // pred_fallthru
      _
    // Predicated region
    $region54: #{tpu_custom_call.1} parent=1 // pred_check
      _
    $region55: #{tpu_custom_call.1} parent=1 // pred_check_branch
      %876 = sbr.rel (0) target = $region57
    $region56: #{tpu_custom_call.1} parent=1 // pred_region
      _
    $region57: #{tpu_custom_call.1} parent=1 // pred_fallthru
      _
    %877 = vsyncpa [#allocation4], 1
    %878 = vsyncpa [#allocation6], 1
    %879 = vsyncpa [#allocation9], 1

</llo_original>
